<compile_context>
chip_gen: v6e
topology: v6e:2x2x1
jax: 0.10.0
libtpu: 0.0.40
codegen_flags: <defaults>
</compile_context>

<pallas_src>
import jax
import jax.numpy as jnp
import numpy as np
from jax.experimental import pallas as pl
from jax.experimental.pallas import tpu as pltpu

NUM_BINS = 198
NUM_HEADS = 3                               # pitch, yaw, roll
N_CAT = NUM_HEADS * NUM_BINS                # 594
N_PAD = 128 * ((N_CAT + 127) // 128)        # 640 -> multiple of 128 lanes
POOL = 7                                    # AvgPool2d((7, 7)), stride == kernel
HW = POOL * POOL                            # 49


def _angles_head_kernel(x_ref, w_ref, b_ref, out_ref):
    # x_ref  : (tb, 49, C) bf16  activations (C on lanes, spatial on sublanes)
    # w_ref  : (C, N_PAD)  bf16  fused [pitch|yaw|roll] weights, 1/49 pre-folded
    # b_ref  : (1, N_PAD)  f32   fused biases (zero in the padded tail)
    # out_ref: (tb, N_PAD) f32   fused, lane-dense head outputs
    # Avg-pool (sans 1/49) with f32 accumulation; result is lane-major over C.
    pooled = jnp.sum(x_ref[...].astype(jnp.float32), axis=1)        # (tb, C)
    # bf16 x bf16 MXU matmul, f32 accumulate.
    out_ref[...] = (
        jnp.dot(pooled.astype(jnp.bfloat16), w_ref[...],
                preferred_element_type=jnp.float32)
        + b_ref[...])


def _pick_tb(B):
    for tb in (128, 64, 32, 16, 8):
        if B % tb == 0:
            return tb
    return B


def angles_head(x_nchw, w_packed, b_packed, *, tb=None):
    """x_nchw: (B, C, 7, 7) f32; w_packed: (C, N_PAD) bf16; b_packed: (1, N_PAD) f32.
    Returns (3, B, 198) matching torch.stack([pitch, yaw, roll])."""
    B, C, H, W = x_nchw.shape
    assert H == POOL and W == POOL, "AnglesHead expects 7x7 spatial input"
    # NCHW -> (B, 49, C) bf16.  If the backbone already emits NHWC (the TPU
    # conv-friendly layout) this transpose is a free reshape at the producer.
    x_kernel = x_nchw.reshape(B, C, HW).transpose(0, 2, 1).astype(jnp.bfloat16)

    if tb is None:
        tb = _pick_tb(B)
    assert B % tb == 0, "batch tile must divide B"
    grid = (B // tb,)

    cost = pl.CostEstimate(
        flops=2 * B * C * N_PAD + B * C * HW,
        transcendentals=0,
        bytes_accessed=(x_kernel.size * 2 + w_packed.size * 2
                        + b_packed.size * 4 + B * N_PAD * 4),
    )
    out = pl.pallas_call(
        _angles_head_kernel,
        out_shape=jax.ShapeDtypeStruct((B, N_PAD), jnp.float32),
        grid_spec=pltpu.PrefetchScalarGridSpec(
            num_scalar_prefetch=0,
            grid=grid,
            in_specs=[
                pl.BlockSpec((tb, HW, C), lambda i: (i, 0, 0)),   # x tile per step
                pl.BlockSpec((C, N_PAD), lambda i: (0, 0)),       # resident weights
                pl.BlockSpec((1, N_PAD), lambda i: (0, 0)),       # resident bias
            ],
            out_specs=pl.BlockSpec((tb, N_PAD), lambda i: (i, 0)),
        ),
        compiler_params=pltpu.CompilerParams(
            dimension_semantics=("parallel",)),
        cost_estimate=cost,
    )(x_kernel, w_packed, b_packed)
    # TODO(synk): on v7x, optionally store packed weights as fp8(e4m3) and feed
    # bf16 x fp8 to the MXU after validating 198-bin logit accuracy downstream.

    # (B, 640) -> (3, B, 198) == torch.stack([pitch, yaw, roll]).  If the
    # consumer can read per-head 198-wide slices, return `out` directly and
    # drop this glue.
    return out[:, :N_CAT].reshape(B, NUM_HEADS, NUM_BINS).transpose(1, 0, 2)


def init_params(key, size):
    """Deterministic synthetic params mimicking torch.nn.Linear(size, 198):
    weight (198, size), bias (198,).  Stored transposed as (size, 198)."""
    keys = jax.random.split(key, 6)
    scale = 1.0 / np.sqrt(size)

    def w(k):
        return jax.random.uniform(k, (size, NUM_BINS), jnp.float32,
                                  minval=-scale, maxval=scale)

    def b(k):
        return jax.random.uniform(k, (1, NUM_BINS), jnp.float32,
                                  minval=-scale, maxval=scale)

    return {
        "wp": w(keys[0]), "bp": b(keys[1]),
        "wy": w(keys[2]), "by": b(keys[3]),
        "wr": w(keys[4]), "br": b(keys[5]),
    }


def pack_params(params):
    """Fuse the three heads, fold the 1/49 pooling scale into the weights,
    pad N to a multiple of 128, and store weights in bf16."""
    w_cat = jnp.concatenate([params["wp"], params["wy"], params["wr"]], axis=1)
    b_cat = jnp.concatenate([params["bp"], params["by"], params["br"]], axis=1)
    w_cat = w_cat / float(POOL * POOL)                 # fold avg-pool 1/49
    pad = N_PAD - N_CAT
    w_packed = jnp.pad(w_cat, ((0, 0), (0, pad))).astype(jnp.bfloat16)
    b_packed = jnp.pad(b_cat, ((0, 0), (0, pad))).astype(jnp.float32)
    return w_packed, b_packed


def reference_torch(x_nchw, params):
    """Faithful f32 reference matching the PyTorch module."""
    B, C, H, W = x_nchw.shape
    pooled = jnp.mean(x_nchw.reshape(B, C, H * W), axis=-1)          # (B, C)
    pitch = pooled @ params["wp"] + params["bp"][0]
    yaw = pooled @ params["wy"] + params["by"][0]
    roll = pooled @ params["wr"] + params["br"][0]
    return jnp.stack([pitch, yaw, roll])


def reference_packed(x_nchw, w_packed, b_packed):
    """Numpy reference using the exact packed (bf16) values the kernel sees."""
    B, C, H, W = x_nchw.shape
    x_bf = np.asarray(x_nchw.astype(jnp.bfloat16).astype(jnp.float32))
    pooled = x_bf.reshape(B, C, H * W).sum(-1)                       # f32 accum
    pooled_bf = np.asarray(
        jnp.asarray(pooled).astype(jnp.bfloat16).astype(jnp.float32))
    w = np.asarray(w_packed.astype(jnp.float32))
    out = pooled_bf.astype(np.float32) @ w + np.asarray(b_packed)
    return out[:, :N_CAT].reshape(B, NUM_HEADS, NUM_BINS).transpose(1, 0, 2)


if __name__ == "__main__":
    key = jax.random.PRNGKey(0)
    k_x, k_p = jax.random.split(key)

    B, C = 32, 32          # size = C = 32 feature channels
    x = jax.random.normal(k_x, (B, C, POOL, POOL), jnp.float32)
    params = init_params(k_p, C)
    w_packed, b_packed = pack_params(params)

    # Single-block path (tiny batch, tb == B, grid of 1).
    out_small = jax.block_until_ready(angles_head(x[:2], w_packed, b_packed))
    assert out_small.shape == (3, 2, NUM_BINS)

    # Multi-step parallel grid over B (4 tiles of 8 rows, resident weights).
    out = jax.block_until_ready(angles_head(x, w_packed, b_packed, tb=8))
    assert out.shape == (3, B, NUM_BINS)

    # Tight check: kernel math vs the same packed bf16 parameters / inputs.
    ref_packed = reference_packed(x, w_packed, b_packed)
    np.testing.assert_allclose(np.asarray(out), ref_packed,
                               rtol=1e-3, atol=1e-3)
    np.testing.assert_allclose(np.asarray(out_small), ref_packed[:, :2],
                               rtol=1e-3, atol=1e-3)

    # Semantic check vs the f32 PyTorch-faithful reference (bf16 tolerance).
    ref_f32 = reference_torch(x, params)
    np.testing.assert_allclose(np.asarray(out), np.asarray(ref_f32),
                               rtol=2e-2, atol=2e-2)

    print("KERNEL_OK")
</pallas_src>

<mosaic_0001>
module attributes {stable_mosaic.version = 11 : i64} {
  func.func @_angles_head_kernel(%arg0: i32, %arg1: memref<2x49x32xbf16, #tpu.memory_space<vmem>>, %arg2: memref<32x640xbf16, #tpu.memory_space<vmem>>, %arg3: memref<1x640xf32, #tpu.memory_space<vmem>>, %arg4: memref<2x640xf32, #tpu.memory_space<vmem>>) attributes {dimension_semantics = [#tpu.dimension_semantics<parallel>], iteration_bounds = array<i64: 1>, scalar_prefetch = 0 : i64, scratch_operands = 0 : i64, tpu.core_type = #tpu.core_type<tc>, window_params = [{transform_indices = @transform_0, window_bounds = array<i64: 2, 49, 32>}, {pipeline_mode = #tpu.pipeline_mode<synchronous>, transform_indices = @transform_1, window_bounds = array<i64: 32, 640>}, {pipeline_mode = #tpu.pipeline_mode<synchronous>, transform_indices = @transform_2, window_bounds = array<i64: 1, 640>}, {transform_indices = @transform_3, window_bounds = array<i64: 2, 640>}]} {
    %c0 = arith.constant 0 : index
    %c0_0 = arith.constant 0 : index
    %c0_1 = arith.constant 0 : index
    %0 = vector.load %arg1[%c0, %c0_0, %c0_1] : memref<2x49x32xbf16, #tpu.memory_space<vmem>>, vector<2x49x32xbf16>
    %1 = arith.extf %0 : vector<2x49x32xbf16> to vector<2x49x32xf32>
    %cst = arith.constant dense<0.000000e+00> : vector<2x32xf32>
    %2 = vector.multi_reduction <add>, %1, %cst [1] : vector<2x49x32xf32> to vector<2x32xf32>
    %3 = arith.truncf %2 : vector<2x32xf32> to vector<2x32xbf16>
    %c0_2 = arith.constant 0 : index
    %c0_3 = arith.constant 0 : index
    %4 = vector.load %arg2[%c0_2, %c0_3] : memref<32x640xbf16, #tpu.memory_space<vmem>>, vector<32x640xbf16>
    %cst_4 = arith.constant dense<0.000000e+00> : vector<2x640xf32>
    %5 = tpu.matmul %3, %4, %cst_4 {dimension_numbers = #tpu.dot_dimension_numbers<[1], [0], [0], [1], [0, 0, 1, 1], [], []>} : vector<2x32xbf16>, vector<32x640xbf16>, vector<2x640xf32> -> vector<2x640xf32>
    %c0_5 = arith.constant 0 : index
    %c0_6 = arith.constant 0 : index
    %6 = vector.load %arg3[%c0_5, %c0_6] : memref<1x640xf32, #tpu.memory_space<vmem>>, vector<1x640xf32>
    %7 = vector.broadcast %6 : vector<1x640xf32> to vector<2x640xf32>
    %8 = arith.addf %5, %7 : vector<2x640xf32>
    %c0_7 = arith.constant 0 : index
    %c0_8 = arith.constant 0 : index
    %9 = vector.load %arg4[%c0_7, %c0_8] : memref<2x640xf32, #tpu.memory_space<vmem>>, vector<2x640xf32>
    tpu.vector_store %arg4[%c0_7, %c0_8], %8 {strides = array<i32>} : memref<2x640xf32, #tpu.memory_space<vmem>>, vector<2x640xf32>,
    return
  }
  func.func @transform_0(%arg0: i32) -> (i32, i32, i32) {
    %c0_i32 = arith.constant 0 : i32
    %c0_i32_0 = arith.constant 0 : i32
    %c0_i32_1 = arith.constant 0 : i32
    return %arg0, %c0_i32, %c0_i32_0 : i32, i32, i32
  }
  func.func @transform_1(%arg0: i32) -> (i32, i32) {
    %c0_i32 = arith.constant 0 : i32
    %c0_i32_0 = arith.constant 0 : i32
    %c0_i32_1 = arith.constant 0 : i32
    return %c0_i32, %c0_i32_0 : i32, i32
  }
  func.func @transform_2(%arg0: i32) -> (i32, i32) {
    %c0_i32 = arith.constant 0 : i32
    %c0_i32_0 = arith.constant 0 : i32
    %c0_i32_1 = arith.constant 0 : i32
    return %c0_i32, %c0_i32_0 : i32, i32
  }
  func.func @transform_3(%arg0: i32) -> (i32, i32) {
    %c0_i32 = arith.constant 0 : i32
    %c0_i32_0 = arith.constant 0 : i32
    return %arg0, %c0_i32 : i32, i32
  }
}

</mosaic_0001>

<llo_original>
// kernel: tpu_custom_call.1
$region0: #{tpu_custom_call.1}
  #allocation0 [shape = 'u32[]', space=smem, size = 0x4, offset = 0x4, fixed_abs, tag = 'smem constant byte address 0x4 - core index']
  #allocation1 [shape = 'u32[144,128]{1,0:T(1,128)}', space=vmem, size = 0x12000, scoped, tag = 'internal scratch']
  %s0 = inlined_call_operand.vmem [shape: bf16[2,49,32], index: 0, kind: input, shape index: {}]
  %s1 = inlined_call_operand.vmem [shape: bf16[32,640], index: 1, kind: input, shape index: {}]
  %s2 = inlined_call_operand.vmem [shape: f32[1,640], index: 2, kind: input, shape index: {}]
  %s3 = inlined_call_operand.hbm [shape: f32[2,640], index: 3, kind: output, shape index: {}]
  %s4 = sld [smem:[#allocation0]]
  $region22: #{tpu_custom_call.1} parent=0
    _
  %s6 = ssub.s32 1, %s4
  %s7 = scalar_select 0, %s6, %s4
  $region1: #{tpu_custom_call.1} parent=0
    #allocation2 [shape = 'u8[5120]{0}', space=vmem, size = 0x1400, scoped, tag = 'output window, operand 0, single buffered']
    #allocation3 [shape = 's32[1]{0}', space=sflag, size = 0x4, scoped, tag = 'scoped memory for tpu_custom_call.1']
    %8 = vsyncpa [#allocation3], 0
    // Predicated region
    $region2: #{tpu_custom_call.1} parent=1 // pred_check
      _
    $region3: #{tpu_custom_call.1} parent=1 // pred_check_branch
      %10 = sbr.rel (0) target = $region5
    $region4: #{tpu_custom_call.1} parent=1 // pred_region
      _
    $region5: #{tpu_custom_call.1} parent=1 // pred_fallthru
      _
    // Predicated region
    $region6: #{tpu_custom_call.1} parent=1 // pred_check
      _
    $region7: #{tpu_custom_call.1} parent=1 // pred_check_branch
      %12 = sbr.rel (0) target = $region9
    $region8: #{tpu_custom_call.1} parent=1 // pred_region
      _
    $region9: #{tpu_custom_call.1} parent=1 // pred_fallthru
      _
    // Predicated region
    $region10: #{tpu_custom_call.1} parent=1 // pred_check
      _
    $region11: #{tpu_custom_call.1} parent=1 // pred_check_branch
      %14 = sbr.rel (0) target = $region13
    $region12: #{tpu_custom_call.1} parent=1 // pred_region
      _
    $region13: #{tpu_custom_call.1} parent=1 // pred_fallthru
      _
    %v16 = vld [vmem:[%s0] sm:$0xf]
    %v17 = vld [vmem:[%s0 + $0x4] sm:$0xf]
    %v18 = vld [vmem:[%s0 + $0x8] sm:$0xf]
    %v19 = vld [vmem:[%s0 + $0xc] sm:$0xf]
    %v20 = vld [vmem:[%s0 + $0x10] sm:$0xf]
    %v21 = vld [vmem:[%s0 + $0x14] sm:$0xf]
    %v22 = vld [vmem:[%s0 + $0x18] sm:$0x1]
    %v23 = vld [vmem:[%s0 + $0x1c] sm:$0xf]
    %v24 = vld [vmem:[%s0 + $0x20] sm:$0xf]
    %v25 = vld [vmem:[%s0 + $0x24] sm:$0xf]
    %v26 = vld [vmem:[%s0 + $0x28] sm:$0xf]
    %v27 = vld [vmem:[%s0 + $0x2c] sm:$0xf]
    %v28 = vld [vmem:[%s0 + $0x30] sm:$0xf]
    %v29 = vld [vmem:[%s0 + $0x34] sm:$0x1]
    %v30 = vunpack.c.l.bf16 %v16
    %v31 = vunpack.c.l.bf16 %v17
    %v32 = vunpack.c.l.bf16 %v18
    %v33 = vunpack.c.l.bf16 %v19
    %v34 = vunpack.c.l.bf16 %v20
    %v35 = vunpack.c.l.bf16 %v21
    %v36 = vunpack.c.l.bf16 %v22
    %v37 = vunpack.c.l.bf16 %v23
    %v38 = vunpack.c.l.bf16 %v24
    %v39 = vunpack.c.l.bf16 %v25
    %v40 = vunpack.c.l.bf16 %v26
    %v41 = vunpack.c.l.bf16 %v27
    %v42 = vunpack.c.l.bf16 %v28
    %v43 = vunpack.c.l.bf16 %v29
    %vm44 = vcmask 261120
    %v45 = vsel %vm44, %v30, 0.0
    %v46 = vsel %vm44, %v31, 0.0
    %v47 = vadd.f32 %v45, %v46
    %v48 = vsel %vm44, %v32, 0.0
    %v49 = vadd.f32 %v47, %v48
    %v50 = vsel %vm44, %v33, 0.0
    %v51 = vadd.f32 %v49, %v50
    %v52 = vsel %vm44, %v34, 0.0
    %v53 = vadd.f32 %v51, %v52
    %v54 = vsel %vm44, %v35, 0.0
    %v55 = vadd.f32 %v53, %v54
    %vm56 = vcmask 253952
    %v57 = vsel %vm56, %v36, 0.0
    %v58 = vadd.f32 %v55, %v57
    %v59 = vrot.slane %v58, 4
    %v60 = vadd.f32 %v58, %v59
    %v61 = vrot.slane %v60, 2
    %v62 = vadd.f32 %v60, %v61
    %v63 = vrot.slane %v62, 1
    %v64 = vadd.f32 %v62, %v63
    %v65 = vsel %vm44, %v37, 0.0
    %v66 = vsel %vm44, %v38, 0.0
    %v67 = vadd.f32 %v65, %v66
    %v68 = vsel %vm44, %v39, 0.0
    %v69 = vadd.f32 %v67, %v68
    %v70 = vsel %vm44, %v40, 0.0
    %v71 = vadd.f32 %v69, %v70
    %v72 = vsel %vm44, %v41, 0.0
    %v73 = vadd.f32 %v71, %v72
    %v74 = vsel %vm44, %v42, 0.0
    %v75 = vadd.f32 %v73, %v74
    %v76 = vsel %vm56, %v43, 0.0
    %v77 = vadd.f32 %v75, %v76
    %v78 = vrot.slane %v77, 4
    %v79 = vadd.f32 %v77, %v78
    %v80 = vrot.slane %v79, 2
    %v81 = vadd.f32 %v79, %v80
    %v82 = vrot.slane %v81, 1
    %v83 = vadd.f32 %v81, %v82
    %v84 = vpack.c.bf16 %v64, %v64
    %v85 = vpack.c.bf16 %v83, %v83
    %v86 = vld [vmem:[%s1] sm:$0xff]
    %v87 = vld [vmem:[%s1 + $0x8] sm:$0xff]
    %v88 = vld [vmem:[%s1 + $0x10] sm:$0xf]
    %v89 = vld [vmem:[%s1 + $0x14] sm:$0xff]
    %v90 = vld [vmem:[%s1 + $0x1c] sm:$0xff]
    %v91 = vld [vmem:[%s1 + $0x24] sm:$0xf]
    %v92 = vld [vmem:[%s1 + $0x28] sm:$0xff]
    %v93 = vld [vmem:[%s1 + $0x30] sm:$0xff]
    %v94 = vld [vmem:[%s1 + $0x38] sm:$0xf]
    %v95 = vld [vmem:[%s1 + $0x3c] sm:$0xff]
    %v96 = vld [vmem:[%s1 + $0x44] sm:$0xff]
    %v97 = vld [vmem:[%s1 + $0x4c] sm:$0xf]
    %v98 = vld [vmem:[%s2] sm:$0x1f]
    %v100 = vlaneseq
    %v101 = vshrl.u32 %v100, 7
    %v102 = vsub.s32 0, %v101
    %v103 = vrot.slane %v98, %v102
    %v104 = vlaneseq
    %v105 = vshrl.u32 %v104, 7
    %v106 = vsub.s32 1, %v105
    %v107 = vrot.slane %v98, %v106
    %v108 = vlaneseq
    %v109 = vshrl.u32 %v108, 7
    %v110 = vsub.s32 2, %v109
    %v111 = vrot.slane %v98, %v110
    %v112 = vlaneseq
    %v113 = vshrl.u32 %v112, 7
    %v114 = vsub.s32 3, %v113
    %v115 = vrot.slane %v98, %v114
    %v116 = vlaneseq
    %v117 = vshrl.u32 %v116, 7
    %v118 = vsub.s32 4, %v117
    %v119 = vrot.slane %v98, %v118
    %v127 = vunpack.c.l.b16 %v84
    %v128 = vunpack.c.l.b16 %v85
    %vm129 = vcmask 1041409
    %v130 = vsel %vm129, %v128, %v127
    %v131 = vpack.c.b16 %v130, %v130
    %v144 = vunpack.c.l.b16 %v86
    %v145 = vunpack.c.h.b16 %v86
    %v146 = vunpack.c.l.b16 %v87
    %v147 = vunpack.c.h.b16 %v87
    %v148 = vunpack.c.l.b16 %v88
    %v149 = vunpack.c.l.b16 %v89
    %v150 = vunpack.c.h.b16 %v89
    %v151 = vunpack.c.l.b16 %v90
    %v152 = vunpack.c.h.b16 %v90
    %v153 = vunpack.c.l.b16 %v91
    %v154 = vunpack.c.l.b16 %v92
    %v155 = vunpack.c.h.b16 %v92
    %v156 = vunpack.c.l.b16 %v93
    %v157 = vunpack.c.h.b16 %v93
    %v158 = vunpack.c.l.b16 %v94
    %v159 = vunpack.c.l.b16 %v95
    %v160 = vunpack.c.h.b16 %v95
    %v161 = vunpack.c.l.b16 %v96
    %v162 = vunpack.c.h.b16 %v96
    %v163 = vunpack.c.l.b16 %v97
    %v164 = vpack.c.b16 %v149, %v144
    %v165 = vpack.c.b16 %v150, %v145
    %v166 = vpack.c.b16 %v151, %v146
    %v167 = vpack.c.b16 %v152, %v147
    %v168 = vpack.c.b16 %v153, %v148
    %v169 = vpack.c.b16 %v159, %v154
    %v170 = vpack.c.b16 %v160, %v155
    %v171 = vpack.c.b16 %v161, %v156
    %v172 = vpack.c.b16 %v162, %v157
    %v173 = vpack.c.b16 %v163, %v158
    %v185 = vsel %vm44, %v131, 0
    %187 = vmatprep.subr.bf16.mxu0 0
    %188 = vmatpush1.bf16.msra.mxu0 0
    %189 = vmatprep.subr.bf16.mxu0 0
    %190 = vmatpush1.bf16.msra.mxu0 0
    %191 = vmatprep.subr.bf16.mxu0 0
    %192 = vmatpush1.bf16.msra.mxu0 0
    %193 = vmatprep.subr.bf16.mxu0 0
    %194 = vmatpush1.bf16.msra.mxu0 0
    %195 = vmatprep.subr.bf16.mxu0 0
    %196 = vmatpush1.bf16.msra.mxu0 0
    %197 = vmatprep.subr.bf16.mxu0 0
    %198 = vmatpush1.bf16.msra.mxu0 0
    %199 = vmatprep.subr.bf16.mxu0 %v170
    %200 = vmatpush1.bf16.msra.mxu0 %v169
    %201 = vmatprep.subr.bf16.mxu0 %v165
    %202 = vmatpush1.bf16.msra.mxu0 %v164
    %203 = vmatprep.subr.bf16.mxu0 0
    %204 = vmatpush2.bf16.msra.mxu0 0
    %205 = vmatprep.subr.bf16.mxu0 0
    %206 = vmatpush2.bf16.msra.mxu0 0
    %207 = vmatprep.subr.bf16.mxu0 0
    %208 = vmatpush2.bf16.msra.mxu0 0
    %209 = vmatprep.subr.bf16.mxu0 0
    %210 = vmatpush2.bf16.msra.mxu0 0
    %211 = vmatprep.subr.bf16.mxu0 0
    %212 = vmatpush2.bf16.msra.mxu0 0
    %213 = vmatprep.subr.bf16.mxu0 0
    %214 = vmatpush2.bf16.msra.mxu0 0
    %215 = vmatprep.subr.bf16.mxu0 0
    %216 = vmatpush2.bf16.msra.mxu0 0
    %217 = vmatprep.subr.bf16.mxu0 0
    %218 = vmatpush2.bf16.msra.mxu0 0
    %219 = vmatprep.mubr.bf16.mxu0 0
    %220 = vmatmul.mubr.bf16.gmra.mxu0 %v185
    %v221 = vpop.f32.mrf.mxu0
    %v222 = vadd.f32 %v103, %v221
    %v223 = vpop.f32.mrf.mxu0
    %v224 = vadd.f32 %v107, %v223
    %v225 = vpop.f32.mrf.mxu0
    %v226 = vpop.f32.mrf.mxu0
    %227 = vdwg.mxu0
    %228 = vmatprep.subr.bf16.mxu0 0
    %229 = vmatpush1.bf16.msra.mxu0 0
    %230 = vmatprep.subr.bf16.mxu0 0
    %231 = vmatpush1.bf16.msra.mxu0 0
    %232 = vmatprep.subr.bf16.mxu0 0
    %233 = vmatpush1.bf16.msra.mxu0 0
    %234 = vmatprep.subr.bf16.mxu0 0
    %235 = vmatpush1.bf16.msra.mxu0 0
    %236 = vmatprep.subr.bf16.mxu0 0
    %237 = vmatpush1.bf16.msra.mxu0 0
    %238 = vmatprep.subr.bf16.mxu0 0
    %239 = vmatpush1.bf16.msra.mxu0 0
    %240 = vmatprep.subr.bf16.mxu0 %v172
    %241 = vmatpush1.bf16.msra.mxu0 %v171
    %242 = vmatprep.subr.bf16.mxu0 %v167
    %243 = vmatpush1.bf16.msra.mxu0 %v166
    %244 = vmatprep.subr.bf16.mxu0 0
    %245 = vmatpush2.bf16.msra.mxu0 0
    %246 = vmatprep.subr.bf16.mxu0 0
    %247 = vmatpush2.bf16.msra.mxu0 0
    %248 = vmatprep.subr.bf16.mxu0 0
    %249 = vmatpush2.bf16.msra.mxu0 0
    %250 = vmatprep.subr.bf16.mxu0 0
    %251 = vmatpush2.bf16.msra.mxu0 0
    %252 = vmatprep.subr.bf16.mxu0 0
    %253 = vmatpush2.bf16.msra.mxu0 0
    %254 = vmatprep.subr.bf16.mxu0 0
    %255 = vmatpush2.bf16.msra.mxu0 0
    %256 = vmatprep.subr.bf16.mxu0 0
    %257 = vmatpush2.bf16.msra.mxu0 0
    %258 = vmatprep.subr.bf16.mxu0 0
    %259 = vmatpush2.bf16.msra.mxu0 0
    %260 = vmatprep.mubr.bf16.mxu0 0
    %261 = vmatmul.mubr.bf16.gmra.mxu0 %v185
    %v262 = vpop.f32.mrf.mxu0
    %v263 = vadd.f32 %v111, %v262
    %v264 = vpop.f32.mrf.mxu0
    %v265 = vadd.f32 %v115, %v264
    %v266 = vpop.f32.mrf.mxu0
    %v267 = vpop.f32.mrf.mxu0
    %268 = vdwg.mxu0
    %269 = vmatprep.subr.bf16.mxu0 0
    %270 = vmatpush1.bf16.msra.mxu0 0
    %271 = vmatprep.subr.bf16.mxu0 0
    %272 = vmatpush1.bf16.msra.mxu0 0
    %273 = vmatprep.subr.bf16.mxu0 0
    %274 = vmatpush1.bf16.msra.mxu0 0
    %275 = vmatprep.subr.bf16.mxu0 0
    %276 = vmatpush1.bf16.msra.mxu0 0
    %277 = vmatprep.subr.bf16.mxu0 0
    %278 = vmatpush1.bf16.msra.mxu0 0
    %279 = vmatprep.subr.bf16.mxu0 0
    %280 = vmatpush1.bf16.msra.mxu0 0
    %281 = vmatprep.subr.bf16.mxu0 0
    %282 = vmatpush1.bf16.msra.mxu0 %v173
    %283 = vmatprep.subr.bf16.mxu0 0
    %284 = vmatpush1.bf16.msra.mxu0 %v168
    %285 = vmatprep.subr.bf16.mxu0 0
    %286 = vmatpush2.bf16.msra.mxu0 0
    %287 = vmatprep.subr.bf16.mxu0 0
    %288 = vmatpush2.bf16.msra.mxu0 0
    %289 = vmatprep.subr.bf16.mxu0 0
    %290 = vmatpush2.bf16.msra.mxu0 0
    %291 = vmatprep.subr.bf16.mxu0 0
    %292 = vmatpush2.bf16.msra.mxu0 0
    %293 = vmatprep.subr.bf16.mxu0 0
    %294 = vmatpush2.bf16.msra.mxu0 0
    %295 = vmatprep.subr.bf16.mxu0 0
    %296 = vmatpush2.bf16.msra.mxu0 0
    %297 = vmatprep.subr.bf16.mxu0 0
    %298 = vmatpush2.bf16.msra.mxu0 0
    %299 = vmatprep.subr.bf16.mxu0 0
    %300 = vmatpush2.bf16.msra.mxu0 0
    %301 = vmatprep.mubr.bf16.mxu0 0
    %302 = vmatmul.mubr.bf16.gmra.mxu0 %v185
    %v303 = vpop.f32.mrf.mxu0
    %v304 = vadd.f32 %v119, %v303
    %v305 = vpop.f32.mrf.mxu0
    %v306 = vpop.f32.mrf.mxu0
    %v307 = vpop.f32.mrf.mxu0
    %308 = vdwg.mxu0
    %v314 = vcombine.low %v222, %v224
    %v315 = vcombine.low %v263, %v265
    %v317 = vunpack.c.l.s4 1983009808
    %v318 = vunpack.c.0.s8 %v317
    %v319 = vlaneseq
    %v320 = vshrl.u32 %v319, 7
    %v321 = vsub.s32 %v318, %v320
    %v322 = vrot.slane %v314, %v321
    %v324 = vunpack.c.l.s4 1983009808
    %v325 = vunpack.c.0.s8 %v324
    %v326 = vlaneseq
    %v327 = vshrl.u32 %v326, 7
    %v328 = vsub.s32 %v325, %v327
    %v329 = vrot.slane %v315, %v328
    %v330 = vcombine.low %v322, %v329
    %v332 = vunpack.c.l.s4 1983009808
    %v333 = vunpack.c.0.s8 %v332
    %v334 = vlaneseq
    %v335 = vshrl.u32 %v334, 7
    %v336 = vsub.s32 %v333, %v335
    %v337 = vrot.slane %v304, %v336
    %340 = vst [vmem:[#allocation2] sm:$0xff] %v330
    %341 = vst [vmem:[#allocation2 + $0x8] sm:$0x3] %v337
    // Predicated region
    $region14: #{tpu_custom_call.1} parent=1 // pred_check
      _
    $region15: #{tpu_custom_call.1} parent=1 // pred_check_branch
      %343 = sbr.rel (0) target = $region17
    $region16: #{tpu_custom_call.1} parent=1 // pred_region
      %s345 = ssub.s32 160, 160
      %346 = vsyncadd [#allocation3], %s345
      %s348 = sshll.u32 [#allocation2], 4
      %s349 = int_to_ptr.vmem [resolvable:$true] %s348
      %351 = dma.vmem_to_hbm [thread:$0]  %s349, 160, %s3, [#allocation3]
    $region17: #{tpu_custom_call.1} parent=1 // pred_fallthru
      _
    // Predicated region
    $region18: #{tpu_custom_call.1} parent=1 // pred_check
      _
    $region19: #{tpu_custom_call.1} parent=1 // pred_check_branch
      %353 = sbr.rel (0) target = $region21
    $region20: #{tpu_custom_call.1} parent=1 // pred_region
      %354 = dma.done [#allocation3], 160
    $region21: #{tpu_custom_call.1} parent=1 // pred_fallthru
      _
    %355 = vsyncpa [#allocation3], 1

</llo_original>
